<compile_context>
chip_gen: v7x
topology: tpu7x:2x2x1
jax: 0.10.0
libtpu: 0.0.40
codegen_flags: <defaults>
</compile_context>

<pallas_src>
import jax
import jax.numpy as jnp
from jax.experimental import pallas as pl
from jax.experimental.pallas import tpu as pltpu


# ----------------------------- kernels ---------------------------------------

def _linear_resident_kernel(x_ref, w_ref, b_ref, o_ref):
    """Whole weight resident in VMEM; one (tm, Np) output tile per grid step.

    x_ref: (tm, Kp) bf16, w_ref: (Kp, Np) bf16, b_ref: (1, Np) f32.
    """
    acc = jnp.dot(x_ref[...], w_ref[...], preferred_element_type=jnp.float32)
    o_ref[...] = (acc + b_ref[...]).astype(o_ref.dtype)


def _linear_tiled_kernel(x_ref, w_ref, b_ref, o_ref, acc_ref):
    """General tiled GEMM; K is the last ("arbitrary") grid axis."""
    k = pl.program_id(2)

    @pl.when(k == 0)
    def _init():
        # Fold the bias into the accumulator init (saves an epilogue VPU add).
        acc_ref[...] = jnp.broadcast_to(b_ref[...], acc_ref.shape)

    acc_ref[...] += jnp.dot(
        x_ref[...], w_ref[...], preferred_element_type=jnp.float32
    )

    @pl.when(k == pl.num_programs(2) - 1)
    def _finalize():
        o_ref[...] = acc_ref[...].astype(o_ref.dtype)


# ----------------------------- wrapper ----------------------------------------

def _round_up(x: int, m: int) -> int:
    return ((x + m - 1) // m) * m


# Explicit scoped-VMEM limit: raises v5e's 16 MiB default, matches the v6e/v7x
# default, and stays well under v7x's 64 MiB physical VMEM.
_VMEM_LIMIT_BYTES = 32 * 1024 * 1024
# Budget for the resident-weight fast path (weight + double-buffered x/out).
_RESIDENT_BUDGET_BYTES = 24 * 1024 * 1024


def linear_pallas(x2d, w_t, b2d, n_out, *, tm=512, tn=256, tk=1024):
    """y[:M, :n_out] = x2d @ W^T + b with bf16 inputs / f32 accumulation.

    x2d : (M, K)            activations (any float dtype; output keeps it)
    w_t : (Kp, Np) bf16     weight, already transposed + zero-padded to 128s
    b2d : (1, Np)  f32      bias, already zero-padded
    """
    M, K = x2d.shape
    Kp, Np = w_t.shape
    assert Kp >= K and b2d.shape == (1, Np)
    out_dtype = x2d.dtype

    # bf16 activations (MXU fast path, half the HBM bytes); pad K to Kp.
    xb = x2d.astype(jnp.bfloat16)
    if Kp != K:
        xb = jnp.pad(xb, ((0, 0), (0, Kp - K)))

    # M tiling: bf16 sublane tile is (16, 128) -> 16-aligned rows.
    m_align = _round_up(M, 16)
    tm = min(tm, m_align)
    # Give v7x's two TensorCores at least two M blocks when M allows it.
    if m_align // tm < 2 and m_align >= 32:
        tm = _round_up(-(-m_align // 2), 16)
    Mp = _round_up(M, tm)
    if Mp != M:
        xb = jnp.pad(xb, ((0, Mp - M), (0, 0)))

    itemsize_in = 2   # bf16
    itemsize_out = jnp.dtype(out_dtype).itemsize

    resident_footprint = (
        Kp * Np * itemsize_in            # resident weight
        + 2 * tm * Kp * itemsize_in      # double-buffered x tiles
        + 2 * tm * Np * itemsize_out     # double-buffered output tiles
        + Np * 4                         # bias
    )

    if resident_footprint <= _RESIDENT_BUDGET_BYTES:
        # -------- resident-weight fast path (the real CBM case) --------------
        grid = (Mp // tm,)
        out = pl.pallas_call(
            _linear_resident_kernel,
            out_shape=jax.ShapeDtypeStruct((Mp, Np), out_dtype),
            grid_spec=pltpu.PrefetchScalarGridSpec(
                num_scalar_prefetch=0,
                grid=grid,
                in_specs=[
                    pl.BlockSpec((tm, Kp), lambda i: (i, 0)),   # x tile
                    pl.BlockSpec((Kp, Np), lambda i: (0, 0)),   # whole W (resident)
                    pl.BlockSpec((1, Np), lambda i: (0, 0)),    # whole bias
                ],
                out_specs=pl.BlockSpec((tm, Np), lambda i: (i, 0)),
            ),
            compiler_params=pltpu.CompilerParams(
                dimension_semantics=("parallel",),
                vmem_limit_bytes=_VMEM_LIMIT_BYTES,
            ),
            cost_estimate=pl.CostEstimate(
                flops=2 * Mp * Np * Kp,
                bytes_accessed=(Mp * Kp + Kp * Np) * itemsize_in
                + Np * 4
                + Mp * Np * itemsize_out,
                transcendentals=0,
            ),
        )(xb, w_t, b2d)
    else:
        # -------- general tiled GEMM (large hidden sizes) ---------------------
        tn = min(tn, Np)
        tk = min(tk, Kp)
        Np2 = _round_up(Np, tn)
        Kp2 = _round_up(Kp, tk)
        wt, bb = w_t, b2d
        if (Kp2, Np2) != (Kp, Np):
            wt = jnp.pad(w_t, ((0, Kp2 - Kp), (0, Np2 - Np)))
            bb = jnp.pad(b2d, ((0, 0), (0, Np2 - Np)))
            xb = jnp.pad(xb, ((0, 0), (0, Kp2 - Kp)))

        grid = (Mp // tm, Np2 // tn, Kp2 // tk)
        out = pl.pallas_call(
            _linear_tiled_kernel,
            out_shape=jax.ShapeDtypeStruct((Mp, Np2), out_dtype),
            grid_spec=pltpu.PrefetchScalarGridSpec(
                num_scalar_prefetch=0,
                grid=grid,
                in_specs=[
                    pl.BlockSpec((tm, tk), lambda i, j, k: (i, k)),   # x tile
                    pl.BlockSpec((tk, tn), lambda i, j, k: (k, j)),   # W^T tile
                    pl.BlockSpec((1, tn), lambda i, j, k: (0, j)),    # bias tile
                ],
                out_specs=pl.BlockSpec((tm, tn), lambda i, j, k: (i, j)),
                scratch_shapes=[pltpu.VMEM((tm, tn), jnp.float32)],
            ),
            compiler_params=pltpu.CompilerParams(
                dimension_semantics=("parallel", "parallel", "arbitrary"),
                vmem_limit_bytes=_VMEM_LIMIT_BYTES,
            ),
            cost_estimate=pl.CostEstimate(
                flops=2 * Mp * Np2 * Kp2,
                bytes_accessed=(Mp * Kp2 * (Np2 // tn)
                                + Kp2 * Np2 * (Mp // tm)) * itemsize_in
                + Np2 * 4
                + Mp * Np2 * itemsize_out,
                transcendentals=0,
            ),
        )(xb, wt, bb)

    if (Mp, out.shape[1]) != (M, n_out):
        out = out[:M, :n_out]
    return out


class OptionalLayerPallas:
    """JAX/Pallas equivalent of CBM's OptionalLayer wrapping a Linear layer.

    `layer_params` is (W, b) with W stored PyTorch-style (out_features,
    in_features).  `active` selects whether the wrapped layer is applied or
    the input passes through unchanged (trace-time branch: no kernel).
    """

    def __init__(self, layer_params, active: bool = False):
        w, b = layer_params
        w = jnp.asarray(w)
        b = jnp.asarray(b)
        self.n_out, self.k_in = w.shape
        kp = _round_up(self.k_in, 128)
        np_ = _round_up(self.n_out, 128)
        # Static prep done ONCE: transpose to (K, N), zero-pad to lane-aligned
        # multiples of 128, cast weight to bf16; bias stays f32.
        w_t = jnp.pad(w.T, ((0, kp - self.k_in), (0, np_ - self.n_out)))
        self.w_t = w_t.astype(jnp.bfloat16)
        self.b2d = jnp.pad(
            b.astype(jnp.float32).reshape(1, -1), ((0, 0), (0, np_ - self.n_out))
        )
        self.active = bool(active)

    def __call__(self, x):
        if not self.active:
            # Inactive path: literally free (no kernel, no HBM round trip).
            return x
        batch, seq, hidden = x.shape
        assert hidden == self.k_in
        x2d = x.reshape(batch * seq, hidden)
        y2d = linear_pallas(x2d, self.w_t, self.b2d, self.n_out)
        return y2d.reshape(batch, seq, self.n_out)


# ----------------------------- demo / check -----------------------------------

if __name__ == "__main__":
    key = jax.random.PRNGKey(0)
    k_x, k_w, k_b = jax.random.split(key, 3)

    batch, seq, hidden = 2, 8, 32
    x = jax.random.normal(k_x, (batch, seq, hidden), dtype=jnp.float32)

    # Deterministic parameter init for the wrapped Linear(hidden -> hidden),
    # matching PyTorch's kaiming-uniform-ish bound 1/sqrt(fan_in).
    bound = 1.0 / (hidden ** 0.5)
    w = jax.random.uniform(k_w, (hidden, hidden), jnp.float32, -bound, bound)
    b = jax.random.uniform(k_b, (hidden,), jnp.float32, -bound, bound)

    # Inactive path: exact identity, zero cost.
    opt_inactive = OptionalLayerPallas((w, b), active=False)
    y_id = jax.block_until_ready(opt_inactive(x))
    assert y_id.shape == x.shape and y_id.dtype == x.dtype
    assert bool(jnp.all(y_id == x))

    # Active path: matches the wrapped linear layer's f32 reference.
    # (bf16 inputs with f32 accumulation -> loosened tolerance.)
    opt_active = OptionalLayerPallas((w, b), active=True)
    y_lin = jax.block_until_ready(opt_active(x))
    y_ref = jnp.einsum("bsh,oh->bso", x, w) + b
    assert y_lin.shape == y_ref.shape and y_lin.dtype == jnp.float32
    assert bool(jnp.allclose(y_lin, y_ref, atol=3e-2, rtol=3e-2))

    print("KERNEL_OK")
</pallas_src>

<mosaic_0001>
module attributes {stable_mosaic.version = 11 : i64} {
  func.func @_linear_resident_kernel(%arg0: i32, %arg1: memref<16x128xbf16, #tpu.memory_space<vmem>>, %arg2: memref<128x128xbf16, #tpu.memory_space<vmem>>, %arg3: memref<1x128xf32, #tpu.memory_space<vmem>>, %arg4: memref<16x128xf32, #tpu.memory_space<vmem>>) attributes {dimension_semantics = [#tpu.dimension_semantics<parallel>], iteration_bounds = array<i64: 1>, scalar_prefetch = 0 : i64, scratch_operands = 0 : i64, tpu.core_type = #tpu.core_type<tc>, window_params = [{transform_indices = @transform_0, window_bounds = array<i64: 16, 128>}, {pipeline_mode = #tpu.pipeline_mode<synchronous>, transform_indices = @transform_1, window_bounds = array<i64: 128, 128>}, {pipeline_mode = #tpu.pipeline_mode<synchronous>, transform_indices = @transform_2, window_bounds = array<i64: 1, 128>}, {transform_indices = @transform_3, window_bounds = array<i64: 16, 128>}]} {
    %c0 = arith.constant 0 : index
    %c0_0 = arith.constant 0 : index
    %0 = vector.load %arg1[%c0, %c0_0] : memref<16x128xbf16, #tpu.memory_space<vmem>>, vector<16x128xbf16>
    %c0_1 = arith.constant 0 : index
    %c0_2 = arith.constant 0 : index
    %1 = vector.load %arg2[%c0_1, %c0_2] : memref<128x128xbf16, #tpu.memory_space<vmem>>, vector<128x128xbf16>
    %cst = arith.constant dense<0.000000e+00> : vector<16x128xf32>
    %2 = tpu.matmul %0, %1, %cst {dimension_numbers = #tpu.dot_dimension_numbers<[1], [0], [0], [1], [0, 0, 1, 1], [], []>} : vector<16x128xbf16>, vector<128x128xbf16>, vector<16x128xf32> -> vector<16x128xf32>
    %c0_3 = arith.constant 0 : index
    %c0_4 = arith.constant 0 : index
    %3 = vector.load %arg3[%c0_3, %c0_4] : memref<1x128xf32, #tpu.memory_space<vmem>>, vector<1x128xf32>
    %4 = vector.broadcast %3 : vector<1x128xf32> to vector<16x128xf32>
    %5 = arith.addf %2, %4 : vector<16x128xf32>
    %c0_5 = arith.constant 0 : index
    %c0_6 = arith.constant 0 : index
    %6 = vector.load %arg4[%c0_5, %c0_6] : memref<16x128xf32, #tpu.memory_space<vmem>>, vector<16x128xf32>
    tpu.vector_store %arg4[%c0_5, %c0_6], %5 {strides = array<i32>} : memref<16x128xf32, #tpu.memory_space<vmem>>, vector<16x128xf32>,
    return
  }
  func.func @transform_0(%arg0: i32) -> (i32, i32) {
    %c0_i32 = arith.constant 0 : i32
    %c0_i32_0 = arith.constant 0 : i32
    return %arg0, %c0_i32 : i32, i32
  }
  func.func @transform_1(%arg0: i32) -> (i32, i32) {
    %c0_i32 = arith.constant 0 : i32
    %c0_i32_0 = arith.constant 0 : i32
    %c0_i32_1 = arith.constant 0 : i32
    return %c0_i32, %c0_i32_0 : i32, i32
  }
  func.func @transform_2(%arg0: i32) -> (i32, i32) {
    %c0_i32 = arith.constant 0 : i32
    %c0_i32_0 = arith.constant 0 : i32
    %c0_i32_1 = arith.constant 0 : i32
    return %c0_i32, %c0_i32_0 : i32, i32
  }
  func.func @transform_3(%arg0: i32) -> (i32, i32) {
    %c0_i32 = arith.constant 0 : i32
    %c0_i32_0 = arith.constant 0 : i32
    return %arg0, %c0_i32 : i32, i32
  }
}

</mosaic_0001>

<llo_original>
// kernel: tpu_custom_call.1
$region0: #{tpu_custom_call.1}
  #allocation0 [shape = 'u32[]', space=smem, size = 0x4, offset = 0x4, fixed_abs, tag = 'smem constant byte address 0x4 - core index']
  #allocation1 [shape = 'u32[144,128]{1,0:T(1,128)}', space=vmem, size = 0x12000, scoped, tag = 'internal scratch']
  %s0 = inlined_call_operand.hbm [shape: bf16[16,128], index: 0, kind: input, shape index: {}]
  %s1 = inlined_call_operand.hbm [shape: bf16[128,128], index: 1, kind: input, shape index: {}]
  %s2 = inlined_call_operand.vmem [shape: f32[1,128], index: 2, kind: input, shape index: {}]
  %s3 = inlined_call_operand.hbm [shape: f32[16,128], index: 3, kind: output, shape index: {}]
  %s4 = sld [smem:[#allocation0]]
  $region30: #{tpu_custom_call.1} parent=0
    _
  %s6 = ssub.s32 1, %s4
  %s7 = scalar_select 0, %s6, %s4
  $region1: #{tpu_custom_call.1} parent=0
    #allocation2 [shape = 'u8[4096]{0}', space=vmem, size = 0x1000, scoped, tag = 'input window, operand 0, single buffered']
    #allocation3 [shape = 's32[1]{0}', space=sflag, size = 0x4, scoped, tag = 'scoped memory for tpu_custom_call.1']
    #allocation4 [shape = 's32[1]{0}', space=sflag, size = 0x4, scoped, tag = 'scoped memory for tpu_custom_call.1']
    #allocation5 [shape = 'u8[32768]{0}', space=vmem, size = 0x8000, scoped, tag = 'input window, operand 1, single buffered']
    #allocation6 [shape = 's32[1]{0}', space=sflag, size = 0x4, scoped, tag = 'scoped memory for tpu_custom_call.1']
    #allocation7 [shape = 'u8[8192]{0}', space=vmem, size = 0x2000, scoped, tag = 'output window, operand 0, single buffered']
    %8 = vsyncpa [#allocation3], 0
    %9 = vsyncpa [#allocation6], 0
    %10 = vsyncpa [#allocation4], 0
    // Predicated region
    $region2: #{tpu_custom_call.1} parent=1 // pred_check
      _
    $region3: #{tpu_custom_call.1} parent=1 // pred_check_branch
      %12 = sbr.rel (0) target = $region5
    $region4: #{tpu_custom_call.1} parent=1 // pred_region
      %s14 = ssub.s32 128, 128
      %15 = vsyncadd [#allocation3], %s14
      %s16 = sshll.u32 [#allocation2], 4
      %s17 = int_to_ptr.vmem [resolvable:$true] %s16
      %22 = dma.hbm_to_vmem [thread:$0]  %s0, 128, %s17, [#allocation3], 64, 64, 4
    $region5: #{tpu_custom_call.1} parent=1 // pred_fallthru
      _
    // Predicated region
    $region6: #{tpu_custom_call.1} parent=1 // pred_check
      _
    $region7: #{tpu_custom_call.1} parent=1 // pred_check_branch
      %24 = sbr.rel (0) target = $region9
    $region8: #{tpu_custom_call.1} parent=1 // pred_region
      %s26 = ssub.s32 1024, 1024
      %27 = vsyncadd [#allocation6], %s26
      %s28 = sshll.u32 [#allocation5], 4
      %s29 = int_to_ptr.vmem [resolvable:$true] %s28
      %34 = dma.hbm_to_vmem [thread:$0]  %s1, 1024, %s29, [#allocation6], 64, 64, 4
    $region9: #{tpu_custom_call.1} parent=1 // pred_fallthru
      _
    // Predicated region
    $region10: #{tpu_custom_call.1} parent=1 // pred_check
      _
    $region11: #{tpu_custom_call.1} parent=1 // pred_check_branch
      %36 = sbr.rel (0) target = $region13
    $region12: #{tpu_custom_call.1} parent=1 // pred_region
      _
    $region13: #{tpu_custom_call.1} parent=1 // pred_fallthru
      _
    // Predicated region
    $region14: #{tpu_custom_call.1} parent=1 // pred_check
      _
    $region15: #{tpu_custom_call.1} parent=1 // pred_check_branch
      %38 = sbr.rel (0) target = $region17
    $region16: #{tpu_custom_call.1} parent=1 // pred_region
      %39 = dma.done [#allocation3], 128
    $region17: #{tpu_custom_call.1} parent=1 // pred_fallthru
      _
    // Predicated region
    $region18: #{tpu_custom_call.1} parent=1 // pred_check
      _
    $region19: #{tpu_custom_call.1} parent=1 // pred_check_branch
      %41 = sbr.rel (0) target = $region21
    $region20: #{tpu_custom_call.1} parent=1 // pred_region
      %42 = dma.done [#allocation6], 1024
    $region21: #{tpu_custom_call.1} parent=1 // pred_fallthru
      _
    %v44 = vld [vmem:[#allocation2] sm:$0xf]
    %v45 = vld [vmem:[#allocation2 + $0x4] sm:$0xf]
    %v46 = vld [vmem:[#allocation5] sm:$0xf]
    %v47 = vld [vmem:[#allocation5 + $0x4] sm:$0xf]
    %v48 = vld [vmem:[#allocation5 + $0x8] sm:$0xf]
    %v49 = vld [vmem:[#allocation5 + $0xc] sm:$0xf]
    %v50 = vld [vmem:[#allocation5 + $0x10] sm:$0xf]
    %v51 = vld [vmem:[#allocation5 + $0x14] sm:$0xf]
    %v52 = vld [vmem:[#allocation5 + $0x18] sm:$0xf]
    %v53 = vld [vmem:[#allocation5 + $0x1c] sm:$0xf]
    %v54 = vld [vmem:[#allocation5 + $0x20] sm:$0xf]
    %v55 = vld [vmem:[#allocation5 + $0x24] sm:$0xf]
    %v56 = vld [vmem:[#allocation5 + $0x28] sm:$0xf]
    %v57 = vld [vmem:[#allocation5 + $0x2c] sm:$0xf]
    %v58 = vld [vmem:[#allocation5 + $0x30] sm:$0xf]
    %v59 = vld [vmem:[#allocation5 + $0x34] sm:$0xf]
    %v60 = vld [vmem:[#allocation5 + $0x38] sm:$0xf]
    %v61 = vld [vmem:[#allocation5 + $0x3c] sm:$0xf]
    %v62 = vld [vmem:[%s2] sm:$0x1]
    %v64 = vlaneseq
    %v65 = vshrl.u32 %v64, 7
    %v66 = vsub.s32 0, %v65
    %v67 = vrot.slane %v62, %v66
    %v71 = vunpack.c.l.b16 %v44
    %v72 = vunpack.c.l.b16 %v45
    %v73 = vpack.c.b16 %v72, %v71
    %v91 = vunpack.c.l.b16 %v46
    %v92 = vunpack.c.l.b16 %v47
    %v93 = vunpack.c.l.b16 %v48
    %v94 = vunpack.c.l.b16 %v49
    %v95 = vunpack.c.l.b16 %v50
    %v96 = vunpack.c.l.b16 %v51
    %v97 = vunpack.c.l.b16 %v52
    %v98 = vunpack.c.l.b16 %v53
    %v99 = vunpack.c.l.b16 %v54
    %v100 = vunpack.c.l.b16 %v55
    %v101 = vunpack.c.l.b16 %v56
    %v102 = vunpack.c.l.b16 %v57
    %v103 = vunpack.c.l.b16 %v58
    %v104 = vunpack.c.l.b16 %v59
    %v105 = vunpack.c.l.b16 %v60
    %v106 = vunpack.c.l.b16 %v61
    %v107 = vpack.c.b16 %v92, %v91
    %v108 = vpack.c.b16 %v94, %v93
    %v109 = vpack.c.b16 %v96, %v95
    %v110 = vpack.c.b16 %v98, %v97
    %v111 = vpack.c.b16 %v100, %v99
    %v112 = vpack.c.b16 %v102, %v101
    %v113 = vpack.c.b16 %v104, %v103
    %v114 = vpack.c.b16 %v106, %v105
    %123 = vmatprep.subr.bf16.mxu0 0
    %124 = vmatpush1.bf16.msra.mxu0 %v107
    %125 = vmatprep.subr.bf16.mxu0 0
    %126 = vmatpush1.bf16.msra.mxu0 %v108
    %127 = vmatprep.subr.bf16.mxu0 0
    %128 = vmatpush1.bf16.msra.mxu0 %v109
    %129 = vmatprep.subr.bf16.mxu0 0
    %130 = vmatpush1.bf16.msra.mxu0 %v110
    %131 = vmatprep.subr.bf16.mxu0 0
    %132 = vmatpush1.bf16.msra.mxu0 %v111
    %133 = vmatprep.subr.bf16.mxu0 0
    %134 = vmatpush1.bf16.msra.mxu0 %v112
    %135 = vmatprep.subr.bf16.mxu0 0
    %136 = vmatpush1.bf16.msra.mxu0 %v113
    %137 = vmatprep.subr.bf16.mxu0 0
    %138 = vmatpush1.bf16.msra.mxu0 %v114
    %139 = vmatprep.subr.bf16.mxu0 0
    %140 = vmatpush1.bf16.msra.mxu0 0
    %141 = vmatprep.subr.bf16.mxu0 0
    %142 = vmatpush1.bf16.msra.mxu0 0
    %143 = vmatprep.subr.bf16.mxu0 0
    %144 = vmatpush1.bf16.msra.mxu0 0
    %145 = vmatprep.subr.bf16.mxu0 0
    %146 = vmatpush1.bf16.msra.mxu0 0
    %147 = vmatprep.subr.bf16.mxu0 0
    %148 = vmatpush1.bf16.msra.mxu0 0
    %149 = vmatprep.subr.bf16.mxu0 0
    %150 = vmatpush1.bf16.msra.mxu0 0
    %151 = vmatprep.subr.bf16.mxu0 0
    %152 = vmatpush1.bf16.msra.mxu0 0
    %153 = vmatprep.subr.bf16.mxu0 0
    %154 = vmatpush1.bf16.msra.mxu0 0
    %155 = vmatprep.mubr.bf16.mxu0 0
    %156 = vmatmul.mubr.bf16.gmra.mrb[0].mxu0 %v73
    %v157 = vpop.f32.mrb[0].mxu0
    %v158 = vadd.f32 %v67, %v157
    %v159 = vpop.f32.mrb[0].mxu0
    %v160 = vpop.f32.mrb[0].mxu0
    %v161 = vadd.f32 %v67, %v160
    %v162 = vpop.f32.mrb[0].mxu0
    %163 = vdwg.mxu0
    %164 = vst [vmem:[#allocation7] sm:$0xff] %v158
    %165 = vst [vmem:[#allocation7 + $0x8] sm:$0xff] %v161
    // Predicated region
    $region22: #{tpu_custom_call.1} parent=1 // pred_check
      _
    $region23: #{tpu_custom_call.1} parent=1 // pred_check_branch
      %167 = sbr.rel (0) target = $region25
    $region24: #{tpu_custom_call.1} parent=1 // pred_region
      %s169 = ssub.s32 256, 256
      %170 = vsyncadd [#allocation4], %s169
      %s171 = sshll.u32 [#allocation7], 4
      %s172 = int_to_ptr.vmem [resolvable:$true] %s171
      %177 = dma.vmem_to_hbm [thread:$0]  %s172, 256, %s3, [#allocation4], 128, 128, 8
    $region25: #{tpu_custom_call.1} parent=1 // pred_fallthru
      _
    // Predicated region
    $region26: #{tpu_custom_call.1} parent=1 // pred_check
      _
    $region27: #{tpu_custom_call.1} parent=1 // pred_check_branch
      %179 = sbr.rel (0) target = $region29
    $region28: #{tpu_custom_call.1} parent=1 // pred_region
      %180 = dma.done [#allocation4], 256
    $region29: #{tpu_custom_call.1} parent=1 // pred_fallthru
      _
    %181 = vsyncpa [#allocation3], 1
    %182 = vsyncpa [#allocation6], 1
    %183 = vsyncpa [#allocation4], 1

</llo_original>
